<compile_context>
chip_gen: v7x
topology: tpu7x:2x2x1
jax: 0.10.0
libtpu: 0.0.40
codegen_flags: <defaults>
</compile_context>

<pallas_src>
import functools

import jax
import jax.numpy as jnp
from jax import lax
from jax.experimental import pallas as pl
from jax.experimental.pallas import tpu as pltpu

BLOCK_SIZE = 8          # T (sequence length / causal window)
HEAD_SIZE = 16
NUM_EMBEDDING = 32      # C
NUM_HEADS = 2           # num_heads * head_size == num_embedding

_W_LANES = 128          # weight slab padded to one full lane tile
_NEG_BIG = -1e30        # finite "masked" value (diagonal is always unmasked)


def _mha_kernel(x_ref, w_ref, o_ref, *, T, C, num_heads, head_size, scale):
    # x_ref: (T, C)            one batch element per grid step
    # w_ref: (C+16, 128)       packed [wq|wk|wv|wp], bias row, causal-bias rows
    # o_ref: (T, C)
    hh = num_heads * head_size
    x = x_ref[...]                                              # (T, C)

    # Fused QKV projection: one lane-dense 128-wide MXU push.  Lanes
    # [3*hh, 128) of the slab hold wp / padding; those result lanes are
    # produced but never read.
    qkv = jnp.dot(x, w_ref[0:C, :],
                  preferred_element_type=jnp.float32)           # (T, 128)

    # Precomputed additive causal bias (0 on/below diagonal, -1e30 above).
    bias = w_ref[C + 8:C + 8 + T, 0:T]                          # (T, T)

    acc = jnp.zeros((T, C), dtype=jnp.float32)
    for h in range(num_heads):                                  # static unroll (H=2)
        lo = h * head_size
        q_h = qkv[:, lo:lo + head_size]                         # (T, hs)
        k_h = qkv[:, hh + lo:hh + lo + head_size]               # (T, hs)
        v_h = qkv[:, 2 * hh + lo:2 * hh + lo + head_size]       # (T, hs)

        # q @ k^T without an explicit transpose: shared contracting dim.
        s = lax.dot_general(q_h, k_h, (((1,), (1,)), ((), ())),
                            preferred_element_type=jnp.float32) * scale
        s = s + bias                                            # causal mask: one VPU add

        # numerically stable softmax, exact reciprocal
        m = jnp.max(s, axis=-1, keepdims=True)
        p = jnp.exp(s - m)
        p = p * pl.reciprocal(jnp.sum(p, axis=-1, keepdims=True), approx=False)

        head_out = jnp.dot(p, v_h, preferred_element_type=jnp.float32)   # (T, hs)

        # Per-head partial output projection (replaces concat + one big matmul).
        wp_h = w_ref[lo:lo + head_size, 3 * hh:3 * hh + C]               # (hs, C)
        acc = acc + jnp.dot(head_out, wp_h, preferred_element_type=jnp.float32)

    bp = w_ref[C:C + 1, 0:C]                                    # (1, C)
    o_ref[...] = (acc + bp).astype(o_ref.dtype)


def _pack_params(wq, wk, wv, wp, bp, T):
    """Pack all parameters + causal additive bias into one (C+16, 128) slab."""
    C, hh = wq.shape
    assert wp.shape == (hh, C) and bp.shape == (C,)
    assert 3 * hh + C <= _W_LANES, "fused weight slab does not fit 128 lanes"
    assert T <= 8, "causal-bias packing assumes block_size <= 8"
    rows = C + 16
    slab = jnp.zeros((rows, _W_LANES), jnp.float32)
    slab = slab.at[:C, 0:hh].set(wq)
    slab = slab.at[:C, hh:2 * hh].set(wk)
    slab = slab.at[:C, 2 * hh:3 * hh].set(wv)
    slab = slab.at[:hh, 3 * hh:3 * hh + C].set(wp)
    slab = slab.at[C, :C].set(bp)
    causal = jnp.where(jnp.tril(jnp.ones((T, T), dtype=bool)), 0.0, _NEG_BIG)
    slab = slab.at[C + 8:C + 8 + T, :T].set(causal.astype(jnp.float32))
    return slab


def multi_head_attention(x, wq, wk, wv, wp, bp,
                         *, num_heads=NUM_HEADS, head_size=HEAD_SIZE):
    """x: (B, T, C) float32.  Returns (B, T, C)."""
    B, T, C = x.shape
    hh = num_heads * head_size
    assert hh == C, "module requires num_heads * head_size == num_embedding"
    scale = float(C) ** -0.5                 # matches PyTorch: scales by C, not hs

    slab = _pack_params(wq, wk, wv, wp, bp, T)
    rows = slab.shape[0]
    x2d = x.reshape(B * T, C)

    # Advisory cost estimate for the XLA scheduler.
    flops = B * (2 * T * C * _W_LANES                       # fused QKV matmul
                 + num_heads * (4 * T * T * head_size       # scores + p@v
                                + 2 * T * head_size * C))   # per-head projection
    transcendentals = B * num_heads * T * T                 # exp in softmax
    bytes_accessed = 4 * (x2d.size + slab.size + B * T * C)

    kernel = functools.partial(_mha_kernel, T=T, C=C, num_heads=num_heads,
                               head_size=head_size, scale=scale)

    out2d = pl.pallas_call(
        kernel,
        out_shape=jax.ShapeDtypeStruct((B * T, C), x.dtype),
        grid_spec=pltpu.PrefetchScalarGridSpec(
            num_scalar_prefetch=0,
            grid=(B,),                                        # one batch elem / step
            in_specs=[
                pl.BlockSpec((T, C), lambda b: (b, 0)),           # x for batch b
                pl.BlockSpec((rows, _W_LANES), lambda b: (0, 0)),  # weights, fetched once
            ],
            out_specs=pl.BlockSpec((T, C), lambda b: (b, 0)),
        ),
        compiler_params=pltpu.CompilerParams(
            dimension_semantics=("parallel",)),               # megacore-shardable
        cost_estimate=pl.CostEstimate(flops=flops,
                                      transcendentals=transcendentals,
                                      bytes_accessed=bytes_accessed),
    )(x2d, slab)

    return out2d.reshape(B, T, C)


def _reference(x, wq, wk, wv, wp, bp, num_heads=NUM_HEADS, head_size=HEAD_SIZE):
    """Pure-JAX mirror of the PyTorch forward, for a correctness check."""
    B, T, C = x.shape
    scale = float(C) ** -0.5
    with jax.default_matmul_precision("highest"):
        q = x @ wq
        k = x @ wk
        v = x @ wv
        mask = jnp.tril(jnp.ones((T, T), dtype=bool))
        outs = []
        for h in range(num_heads):
            sl = slice(h * head_size, (h + 1) * head_size)
            s = jnp.einsum("btd,bsd->bts", q[..., sl], k[..., sl]) * scale
            s = jnp.where(mask, s, -jnp.inf)
            p = jax.nn.softmax(s, axis=-1)
            outs.append(jnp.einsum("bts,bsd->btd", p, v[..., sl]))
        cat = jnp.concatenate(outs, axis=-1)
        return cat @ wp + bp


if __name__ == "__main__":
    key = jax.random.PRNGKey(0)
    kx, kq, kk, kv, kp, kb = jax.random.split(key, 6)

    B, T, C = 2, BLOCK_SIZE, NUM_EMBEDDING
    hh = NUM_HEADS * HEAD_SIZE  # 32 == C

    bound_in = 1.0 / (C ** 0.5)
    x = jax.random.normal(kx, (B, T, C), dtype=jnp.float32)
    # stored pre-transposed: x @ w  ==  nn.Linear(weight=w.T)(x)
    wq = jax.random.uniform(kq, (C, hh), jnp.float32, -bound_in, bound_in)
    wk = jax.random.uniform(kk, (C, hh), jnp.float32, -bound_in, bound_in)
    wv = jax.random.uniform(kv, (C, hh), jnp.float32, -bound_in, bound_in)
    bound_p = 1.0 / (hh ** 0.5)
    wp = jax.random.uniform(kp, (hh, C), jnp.float32, -bound_p, bound_p)
    bp = jax.random.uniform(kb, (C,), jnp.float32, -bound_p, bound_p)

    out = multi_head_attention(x, wq, wk, wv, wp, bp)
    out = jax.block_until_ready(out)

    ref = _reference(x, wq, wk, wv, wp, bp)
    assert out.shape == (B, T, C)
    # exact reciprocal + finite mask underflow -> tight tolerance
    assert jnp.allclose(out, ref, atol=1e-4, rtol=1e-4), "mismatch vs reference"
    print("KERNEL_OK")
</pallas_src>

<mosaic_0001>
module attributes {stable_mosaic.version = 11 : i64} {
  func.func @_mha_kernel(%arg0: i32, %arg1: memref<8x32xf32, #tpu.memory_space<vmem>>, %arg2: memref<48x128xf32, #tpu.memory_space<vmem>>, %arg3: memref<8x32xf32, #tpu.memory_space<vmem>>) attributes {dimension_semantics = [#tpu.dimension_semantics<parallel>], iteration_bounds = array<i64: 2>, scalar_prefetch = 0 : i64, scratch_operands = 0 : i64, tpu.core_type = #tpu.core_type<tc>, window_params = [{transform_indices = @transform_0, window_bounds = array<i64: 8, 32>}, {pipeline_mode = #tpu.pipeline_mode<synchronous>, transform_indices = @transform_1, window_bounds = array<i64: 48, 128>}, {transform_indices = @transform_2, window_bounds = array<i64: 8, 32>}]} {
    %c0 = arith.constant 0 : index
    %c0_0 = arith.constant 0 : index
    %0 = vector.load %arg1[%c0, %c0_0] : memref<8x32xf32, #tpu.memory_space<vmem>>, vector<8x32xf32>
    %c0_1 = arith.constant 0 : index
    %c0_2 = arith.constant 0 : index
    %1 = vector.load %arg2[%c0_1, %c0_2] : memref<48x128xf32, #tpu.memory_space<vmem>>, vector<32x128xf32>
    %cst = arith.constant dense<0.000000e+00> : vector<8x128xf32>
    %2 = tpu.matmul %0, %1, %cst {dimension_numbers = #tpu.dot_dimension_numbers<[1], [0], [0], [1], [0, 0, 1, 1], [], []>} : vector<8x32xf32>, vector<32x128xf32>, vector<8x128xf32> -> vector<8x128xf32>
    %c40 = arith.constant 40 : index
    %c0_3 = arith.constant 0 : index
    %3 = vector.load %arg2[%c40, %c0_3] : memref<48x128xf32, #tpu.memory_space<vmem>>, vector<8x8xf32>
    %cst_4 = arith.constant 0.000000e+00 : f32
    %4 = vector.broadcast %cst_4 : f32 to vector<8x32xf32>
    %5 = vector.extract_strided_slice %2 {offsets = [0, 0], sizes = [8, 16], strides = [1, 1]} : vector<8x128xf32> to vector<8x16xf32>
    %6 = vector.extract_strided_slice %2 {offsets = [0, 32], sizes = [8, 16], strides = [1, 1]} : vector<8x128xf32> to vector<8x16xf32>
    %7 = vector.extract_strided_slice %2 {offsets = [0, 64], sizes = [8, 16], strides = [1, 1]} : vector<8x128xf32> to vector<8x16xf32>
    %cst_5 = arith.constant dense<0.000000e+00> : vector<8x8xf32>
    %8 = tpu.matmul %5, %6, %cst_5 {dimension_numbers = #tpu.dot_dimension_numbers<[1], [1], [0], [0], [0, 0, 1, 0], [], []>} : vector<8x16xf32>, vector<8x16xf32>, vector<8x8xf32> -> vector<8x8xf32>
    %cst_6 = arith.constant 0.176776692 : f32
    %9 = vector.broadcast %cst_6 : f32 to vector<8x8xf32>
    %10 = arith.mulf %8, %9 : vector<8x8xf32>
    %11 = arith.addf %10, %3 : vector<8x8xf32>
    %cst_7 = arith.constant dense<0xFF800000> : vector<8xf32>
    %12 = vector.multi_reduction <maximumf>, %11, %cst_7 [1] : vector<8x8xf32> to vector<8xf32>
    %13 = vector.shape_cast %12 : vector<8xf32> to vector<8x1xf32>
    %14 = vector.broadcast %13 : vector<8x1xf32> to vector<8x8xf32>
    %15 = arith.subf %11, %14 : vector<8x8xf32>
    %16 = math.exp %15 : vector<8x8xf32>
    %cst_8 = arith.constant dense<0.000000e+00> : vector<8xf32>
    %17 = vector.multi_reduction <add>, %16, %cst_8 [1] : vector<8x8xf32> to vector<8xf32>
    %18 = vector.shape_cast %17 : vector<8xf32> to vector<8x1xf32>
    %19 = tpu.reciprocal %18 : vector<8x1xf32> -> vector<8x1xf32>
    %20 = vector.broadcast %19 : vector<8x1xf32> to vector<8x8xf32>
    %21 = arith.mulf %16, %20 : vector<8x8xf32>
    %cst_9 = arith.constant dense<0.000000e+00> : vector<8x16xf32>
    %22 = tpu.matmul %21, %7, %cst_9 {dimension_numbers = #tpu.dot_dimension_numbers<[1], [0], [0], [1], [0, 0, 1, 1], [], []>} : vector<8x8xf32>, vector<8x16xf32>, vector<8x16xf32> -> vector<8x16xf32>
    %c0_10 = arith.constant 0 : index
    %c96 = arith.constant 96 : index
    %23 = vector.load %arg2[%c0_10, %c96] : memref<48x128xf32, #tpu.memory_space<vmem>>, vector<16x32xf32>
    %cst_11 = arith.constant dense<0.000000e+00> : vector<8x32xf32>
    %24 = tpu.matmul %22, %23, %cst_11 {dimension_numbers = #tpu.dot_dimension_numbers<[1], [0], [0], [1], [0, 0, 1, 1], [], []>} : vector<8x16xf32>, vector<16x32xf32>, vector<8x32xf32> -> vector<8x32xf32>
    %25 = arith.addf %4, %24 : vector<8x32xf32>
    %26 = vector.extract_strided_slice %2 {offsets = [0, 16], sizes = [8, 16], strides = [1, 1]} : vector<8x128xf32> to vector<8x16xf32>
    %27 = vector.extract_strided_slice %2 {offsets = [0, 48], sizes = [8, 16], strides = [1, 1]} : vector<8x128xf32> to vector<8x16xf32>
    %28 = vector.extract_strided_slice %2 {offsets = [0, 80], sizes = [8, 16], strides = [1, 1]} : vector<8x128xf32> to vector<8x16xf32>
    %cst_12 = arith.constant dense<0.000000e+00> : vector<8x8xf32>
    %29 = tpu.matmul %26, %27, %cst_12 {dimension_numbers = #tpu.dot_dimension_numbers<[1], [1], [0], [0], [0, 0, 1, 0], [], []>} : vector<8x16xf32>, vector<8x16xf32>, vector<8x8xf32> -> vector<8x8xf32>
    %cst_13 = arith.constant 0.176776692 : f32
    %30 = vector.broadcast %cst_13 : f32 to vector<8x8xf32>
    %31 = arith.mulf %29, %30 : vector<8x8xf32>
    %32 = arith.addf %31, %3 : vector<8x8xf32>
    %cst_14 = arith.constant dense<0xFF800000> : vector<8xf32>
    %33 = vector.multi_reduction <maximumf>, %32, %cst_14 [1] : vector<8x8xf32> to vector<8xf32>
    %34 = vector.shape_cast %33 : vector<8xf32> to vector<8x1xf32>
    %35 = vector.broadcast %34 : vector<8x1xf32> to vector<8x8xf32>
    %36 = arith.subf %32, %35 : vector<8x8xf32>
    %37 = math.exp %36 : vector<8x8xf32>
    %cst_15 = arith.constant dense<0.000000e+00> : vector<8xf32>
    %38 = vector.multi_reduction <add>, %37, %cst_15 [1] : vector<8x8xf32> to vector<8xf32>
    %39 = vector.shape_cast %38 : vector<8xf32> to vector<8x1xf32>
    %40 = tpu.reciprocal %39 : vector<8x1xf32> -> vector<8x1xf32>
    %41 = vector.broadcast %40 : vector<8x1xf32> to vector<8x8xf32>
    %42 = arith.mulf %37, %41 : vector<8x8xf32>
    %cst_16 = arith.constant dense<0.000000e+00> : vector<8x16xf32>
    %43 = tpu.matmul %42, %28, %cst_16 {dimension_numbers = #tpu.dot_dimension_numbers<[1], [0], [0], [1], [0, 0, 1, 1], [], []>} : vector<8x8xf32>, vector<8x16xf32>, vector<8x16xf32> -> vector<8x16xf32>
    %c16 = arith.constant 16 : index
    %c96_17 = arith.constant 96 : index
    %44 = vector.load %arg2[%c16, %c96_17] : memref<48x128xf32, #tpu.memory_space<vmem>>, vector<16x32xf32>
    %cst_18 = arith.constant dense<0.000000e+00> : vector<8x32xf32>
    %45 = tpu.matmul %43, %44, %cst_18 {dimension_numbers = #tpu.dot_dimension_numbers<[1], [0], [0], [1], [0, 0, 1, 1], [], []>} : vector<8x16xf32>, vector<16x32xf32>, vector<8x32xf32> -> vector<8x32xf32>
    %46 = arith.addf %25, %45 : vector<8x32xf32>
    %c32 = arith.constant 32 : index
    %c0_19 = arith.constant 0 : index
    %47 = vector.load %arg2[%c32, %c0_19] : memref<48x128xf32, #tpu.memory_space<vmem>>, vector<1x32xf32>
    %48 = vector.broadcast %47 : vector<1x32xf32> to vector<8x32xf32>
    %49 = arith.addf %46, %48 : vector<8x32xf32>
    %c0_20 = arith.constant 0 : index
    %c0_21 = arith.constant 0 : index
    %50 = vector.load %arg3[%c0_20, %c0_21] : memref<8x32xf32, #tpu.memory_space<vmem>>, vector<8x32xf32>
    tpu.vector_store %arg3[%c0_20, %c0_21], %49 {strides = array<i32>} : memref<8x32xf32, #tpu.memory_space<vmem>>, vector<8x32xf32>,
    return
  }
  func.func @transform_0(%arg0: i32) -> (i32, i32) {
    %c0_i32 = arith.constant 0 : i32
    %c0_i32_0 = arith.constant 0 : i32
    return %arg0, %c0_i32 : i32, i32
  }
  func.func @transform_1(%arg0: i32) -> (i32, i32) {
    %c0_i32 = arith.constant 0 : i32
    %c0_i32_0 = arith.constant 0 : i32
    %c0_i32_1 = arith.constant 0 : i32
    return %c0_i32, %c0_i32_0 : i32, i32
  }
  func.func @transform_2(%arg0: i32) -> (i32, i32) {
    %c0_i32 = arith.constant 0 : i32
    %c0_i32_0 = arith.constant 0 : i32
    return %arg0, %c0_i32 : i32, i32
  }
}

</mosaic_0001>

<llo_original>
// kernel: tpu_custom_call.1
$region0: #{tpu_custom_call.1}
  #allocation0 [shape = 'u32[]', space=smem, size = 0x4, offset = 0x4, fixed_abs, tag = 'smem constant byte address 0x4 - core index']
  #allocation1 [shape = 'u32[144,128]{1,0:T(1,128)}', space=vmem, size = 0x12000, scoped, tag = 'internal scratch']
  %s0 = inlined_call_operand.hbm [shape: f32[16,32], index: 0, kind: input, shape index: {}]
  %s1 = inlined_call_operand.hbm [shape: f32[48,128], index: 1, kind: input, shape index: {}]
  %s2 = inlined_call_operand.hbm [shape: f32[16,32], index: 2, kind: output, shape index: {}]
  %s3 = sld [smem:[#allocation0]]
  $region49: #{tpu_custom_call.1} parent=0
    _
  %s5 = ssub.s32 1, %s3
  %s6 = scalar_select 0, %s5, %s3
  $region1: #{tpu_custom_call.1} parent=0
    #allocation2 [shape = 'u8[8192]{0}', space=vmem, size = 0x2000, scoped, tag = 'input window, operand 0']
    #allocation3 [shape = 's32[2]{0}', space=sflag, size = 0x8, scoped, tag = 'scoped memory for tpu_custom_call.1']
    #allocation4 [shape = 's32[2]{0}', space=sflag, size = 0x8, scoped, tag = 'scoped memory for tpu_custom_call.1']
    #allocation5 [shape = 'u8[24576]{0}', space=vmem, size = 0x6000, scoped, tag = 'input window, operand 1, single buffered']
    #allocation6 [shape = 's32[1]{0}', space=sflag, size = 0x4, scoped, tag = 'scoped memory for tpu_custom_call.1']
    #allocation7 [shape = 'u8[8192]{0}', space=vmem, size = 0x2000, scoped, tag = 'output window, operand 0']
    %7 = vsyncpa [#allocation3], 0
    %s8 = scalar_lea.sflag [#allocation3], 1
    %9 = vsyncpa %s8, 0
    %10 = vsyncpa [#allocation6], 0
    %11 = vsyncpa [#allocation4], 0
    %s12 = scalar_lea.sflag [#allocation4], 1
    %13 = vsyncpa %s12, 0
    loop: start=0, step=1, limit=4
    $region2: #{tpu_custom_call.1} parent=1 // loop_pre_header
      _
    $region3: #{tpu_custom_call.1} parent=1 // loop_header
      %s15 = sphi 0, %s19
      %p16 = scmp.ge.s32.totalorder %s15, 4
      %s25 = sphi 0, %s27
      %s28 = sphi 0, %s25
      %s29 = sphi 0, %s28
      %s45 = sphi 0, %s29
      %s49 = sphi 0, %s49
      %s51 = sphi 0, %s49
      %s52 = sphi 0, %s51
      %s66 = sphi 0, %s52
      %s72 = sphi 0, %s74
      %s75 = sphi 0, %s72
      %s76 = sphi 0, %s75
      %s92 = sphi 0, %s76
    $region4: #{tpu_custom_call.1} parent=1 // loop_header_branch
      %18 = sbr.rel (%p16) target = $region8
    $region5: #{tpu_custom_call.1} parent=1 // loop_body
      %s20 = ssub.s32 %s15, 1
      %s21 = ssub.s32 %s15, 2
      %s22 = sadd.s32 %s15, 1
      %s23 = ssub.s32 %s15, %s22
      %p24 = scmp.eq.s32.totalorder %s23, 0
      %s26 = sadd.s32 %s25, 1
      %s27 = scalar_select %p24, %s25, %s26
      %p30 = pneg %p24
      %p31 = scmp.eq.s32.totalorder %s15, 1
      %p32 = por %p30, %p31
      %p33 = scmp.ne.s32.totalorder %s25, %s28
      %p34 = scmp.eq.s32.totalorder %s15, 0
      %p35 = por %p33, %p34
      %p36 = scmp.ne.s32.totalorder %s25, %s28
      %p37 = scmp.eq.s32.totalorder %s20, 1
      %p38 = por %p36, %p37
      %p39 = scmp.ne.s32.totalorder %s28, %s29
      %p40 = scmp.eq.s32.totalorder %s20, 0
      %p41 = por %p39, %p40
      %p42 = scmp.ne.s32.totalorder %s28, %s29
      %p43 = scmp.eq.s32.totalorder %s21, 1
      %p44 = por %p42, %p43
      %p46 = scmp.ne.s32.totalorder %s29, %s45
      %p47 = scmp.eq.s32.totalorder %s21, 0
      %p48 = por %p46, %p47
      %s50 = sadd.s32 %s49, 1
      %p53 = scmp.eq.s32.totalorder %s15, 1
      %p54 = scmp.ne.s32.totalorder %s49, %s51
      %p55 = scmp.eq.s32.totalorder %s15, 0
      %p56 = por %p54, %p55
      %p57 = scmp.ne.s32.totalorder %s49, %s51
      %p58 = scmp.eq.s32.totalorder %s20, 1
      %p59 = por %p57, %p58
      %p60 = scmp.ne.s32.totalorder %s51, %s52
      %p61 = scmp.eq.s32.totalorder %s20, 0
      %p62 = por %p60, %p61
      %p63 = scmp.ne.s32.totalorder %s51, %s52
      %p64 = scmp.eq.s32.totalorder %s21, 1
      %p65 = por %p63, %p64
      %p67 = scmp.ne.s32.totalorder %s52, %s66
      %p68 = scmp.eq.s32.totalorder %s21, 0
      %p69 = por %p67, %p68
      %s70 = ssub.s32 %s15, %s22
      %p71 = scmp.eq.s32.totalorder %s70, 0
      %s73 = sadd.s32 %s72, 1
      %s74 = scalar_select %p71, %s72, %s73
      %p77 = pneg %p71
      %p78 = scmp.eq.s32.totalorder %s15, 1
      %p79 = por %p77, %p78
      %p80 = scmp.ne.s32.totalorder %s72, %s75
      %p81 = scmp.eq.s32.totalorder %s15, 0
      %p82 = por %p80, %p81
      %p83 = scmp.ne.s32.totalorder %s72, %s75
      %p84 = scmp.eq.s32.totalorder %s20, 1
      %p85 = por %p83, %p84
      %p86 = scmp.ne.s32.totalorder %s75, %s76
      %p87 = scmp.eq.s32.totalorder %s20, 0
      %p88 = por %p86, %p87
      %p89 = scmp.ne.s32.totalorder %s75, %s76
      %p90 = scmp.eq.s32.totalorder %s21, 1
      %p91 = por %p89, %p90
      %p93 = scmp.ne.s32.totalorder %s76, %s92
      %p94 = scmp.eq.s32.totalorder %s21, 0
      %p95 = por %p93, %p94
      %p96 = scmp.le.s32.totalorder 1, %s15
      %p97 = scmp.lt.s32.totalorder %s15, 3
      %p98 = pnand %p96, %p97
      %p99 = pneg %p98
      // Predicated region
      $region9: #{tpu_custom_call.1} parent=5 // pred_check
        _
      $region10: #{tpu_custom_call.1} parent=5 // pred_check_branch
        %101 = sbr.rel (%p98) target = $region12
      $region11: #{tpu_custom_call.1} parent=5 // pred_region
        %s102 = ssub.s32 %s15, 1
        // Predicated region
        $region13: #{tpu_custom_call.1} parent=11 // pred_check
          %p103 = pneg %p62
        $region14: #{tpu_custom_call.1} parent=11 // pred_check_branch
          %105 = sbr.rel (%p103) target = $region16
        $region15: #{tpu_custom_call.1} parent=11 // pred_region
          %s107 = ssub.s32 768, 768
          %108 = vsyncadd [#allocation6], %s107
          %s109 = sshll.u32 [#allocation5], 4
          %s110 = int_to_ptr.vmem [resolvable:$true] %s109
          %115 = dma.hbm_to_vmem [thread:$0]  %s1, 768, %s110, [#allocation6], 128, 128, 8
        $region16: #{tpu_custom_call.1} parent=11 // pred_fallthru
          _
      $region12: #{tpu_custom_call.1} parent=5 // pred_fallthru
        _
      %p116 = scmp.lt.s32.totalorder %s15, 2
      // Predicated region
      $region17: #{tpu_custom_call.1} parent=5 // pred_check
        %p117 = pneg %p116
      $region18: #{tpu_custom_call.1} parent=5 // pred_check_branch
        %119 = sbr.rel (%p117) target = $region20
      $region19: #{tpu_custom_call.1} parent=5 // pred_region
        // Predicated region
        $region21: #{tpu_custom_call.1} parent=19 // pred_check
          %p120 = pneg %p35
        $region22: #{tpu_custom_call.1} parent=19 // pred_check_branch
          %122 = sbr.rel (%p120) target = $region24
        $region23: #{tpu_custom_call.1} parent=19 // pred_region
          %s123 = sand.u32 %s25, 1
          %s124 = scalar_lea.sflag [#allocation3], %s123
          %s125 = sand.u32 %s25, 1
          %s126 = smul.addr %s125, 8
          %s127 = scalar_lea.vmem [#allocation2], %s126
          %s129 = ssub.s32 128, 128
          %130 = vsyncadd %s124, %s129
          %s131 = smul.addr %s15, 128
          %s132 = scalar_lea.hbm %s0, %s131
          %s134 = sshll.u32 %s127, 4
          %s135 = int_to_ptr.vmem [resolvable:$true] %s134
          %137 = dma.hbm_to_vmem [thread:$0]  %s132, 128, %s135, %s124
        $region24: #{tpu_custom_call.1} parent=19 // pred_fallthru
          _
      $region20: #{tpu_custom_call.1} parent=5 // pred_fallthru
        _
      %p138 = scmp.le.s32.totalorder 1, %s15
      %p139 = scmp.lt.s32.totalorder %s15, 3
      %p140 = pnand %p138, %p139
      %p141 = pneg %p140
      // Predicated region
      $region25: #{tpu_custom_call.1} parent=5 // pred_check
        _
      $region26: #{tpu_custom_call.1} parent=5 // pred_check_branch
        %143 = sbr.rel (%p140) target = $region28
      $region27: #{tpu_custom_call.1} parent=5 // pred_region
        %s144 = ssub.s32 %s15, 1
        %s145 = sand.u32 %s28, 1
        %s146 = scalar_lea.sflag [#allocation3], %s145
        %s147 = sand.u32 %s28, 1
        %s148 = smul.addr %s147, 8
        %s149 = scalar_lea.vmem [#allocation2], %s148
        // Predicated region
        $region29: #{tpu_custom_call.1} parent=27 // pred_check
          %p150 = pneg %p41
        $region30: #{tpu_custom_call.1} parent=27 // pred_check_branch
          %152 = sbr.rel (%p150) target = $region32
        $region31: #{tpu_custom_call.1} parent=27 // pred_region
          %153 = dma.done %s146, 128
        $region32: #{tpu_custom_call.1} parent=27 // pred_fallthru
          _
        // Predicated region
        $region33: #{tpu_custom_call.1} parent=27 // pred_check
          %p154 = pneg %p62
        $region34: #{tpu_custom_call.1} parent=27 // pred_check_branch
          %156 = sbr.rel (%p154) target = $region36
        $region35: #{tpu_custom_call.1} parent=27 // pred_region
          %157 = dma.done [#allocation6], 768
        $region36: #{tpu_custom_call.1} parent=27 // pred_fallthru
          _
        %s158 = sand.u32 %s28, 1
        %s159 = scalar_lea.sflag [#allocation3], %s158
        %s160 = sand.u32 %s28, 1
        %s161 = smul.addr %s160, 8
        %s162 = scalar_lea.vmem [#allocation2], %s161
        %p163 = pneg %p41
        %p164 = pneg %p38
        %p165 = pneg %p62
        %p166 = pneg %p59
        %p167 = pneg %p88
        %p168 = pneg %p85
        %s169 = sand.u32 %s75, 1
        %s170 = scalar_lea.sflag [#allocation4], %s169
        %s171 = sand.u32 %s75, 1
        %s172 = smul.addr %s171, 8
        %s173 = scalar_lea.vmem [#allocation7], %s172
        %v174 = vld [vmem:[%s149] sm:$0xff]
        %v175 = vld [vmem:[#allocation5] sm:$0xff]
        %v176 = vld [vmem:[#allocation5 + $0x8] sm:$0xff]
        %v177 = vld [vmem:[#allocation5 + $0x10] sm:$0xff]
        %v178 = vld [vmem:[#allocation5 + $0x18] sm:$0xff]
        %vm179 = vcmask 261120
        %v181 = vsel %vm179, %v174, 0
        %183 = vmatprep.subr.mxu0 0.0
        %184 = vmatpush1.msra.mxu0 %v175
        %185 = vmatprep.subr.mxu0 0.0
        %186 = vmatpush1.msra.mxu0 %v176
        %187 = vmatprep.subr.mxu0 0.0
        %188 = vmatpush1.msra.mxu0 %v177
        %189 = vmatprep.subr.mxu0 0.0
        %190 = vmatpush1.msra.mxu0 %v178
        %191 = vmatprep.subr.mxu0 0.0
        %192 = vmatpush1.msra.mxu0 0.0
        %193 = vmatprep.subr.mxu0 0.0
        %194 = vmatpush1.msra.mxu0 0.0
        %195 = vmatprep.subr.mxu0 0.0
        %196 = vmatpush1.msra.mxu0 0.0
        %197 = vmatprep.subr.mxu0 0.0
        %198 = vmatpush1.msra.mxu0 0.0
        %199 = vmatprep.subr.mxu0 0.0
        %200 = vmatpush1.msra.mxu0 0.0
        %201 = vmatprep.subr.mxu0 0.0
        %202 = vmatpush1.msra.mxu0 0.0
        %203 = vmatprep.subr.mxu0 0.0
        %204 = vmatpush1.msra.mxu0 0.0
        %205 = vmatprep.subr.mxu0 0.0
        %206 = vmatpush1.msra.mxu0 0.0
        %207 = vmatprep.subr.mxu0 0.0
        %208 = vmatpush1.msra.mxu0 0.0
        %209 = vmatprep.subr.mxu0 0.0
        %210 = vmatpush1.msra.mxu0 0.0
        %211 = vmatprep.subr.mxu0 0.0
        %212 = vmatpush1.msra.mxu0 0.0
        %213 = vmatprep.subr.mxu0 0.0
        %214 = vmatpush1.msra.mxu0 0.0
        %215 = vmatprep.subr.mxu0 0.0
        %216 = vmatpush1.msra.mxu0 0.0
        %217 = vmatprep.subr.mxu0 0.0
        %218 = vmatpush1.msra.mxu0 0.0
        %219 = vmatprep.subr.mxu0 0.0
        %220 = vmatpush1.msra.mxu0 0.0
        %221 = vmatprep.subr.mxu0 0.0
        %222 = vmatpush1.msra.mxu0 0.0
        %223 = vmatprep.subr.mxu0 0.0
        %224 = vmatpush1.msra.mxu0 0.0
        %225 = vmatprep.subr.mxu0 0.0
        %226 = vmatpush1.msra.mxu0 0.0
        %227 = vmatprep.subr.mxu0 0.0
        %228 = vmatpush1.msra.mxu0 0.0
        %229 = vmatprep.subr.mxu0 0.0
        %230 = vmatpush1.msra.mxu0 0.0
        %231 = vmatprep.subr.mxu0 0.0
        %232 = vmatpush1.msra.mxu0 0.0
        %233 = vmatprep.subr.mxu0 0.0
        %234 = vmatpush1.msra.mxu0 0.0
        %235 = vmatprep.subr.mxu0 0.0
        %236 = vmatpush1.msra.mxu0 0.0
        %237 = vmatprep.subr.mxu0 0.0
        %238 = vmatpush1.msra.mxu0 0.0
        %239 = vmatprep.subr.mxu0 0.0
        %240 = vmatpush1.msra.mxu0 0.0
        %241 = vmatprep.subr.mxu0 0.0
        %242 = vmatpush1.msra.mxu0 0.0
        %243 = vmatprep.subr.mxu0 0.0
        %244 = vmatpush1.msra.mxu0 0.0
        %245 = vmatprep.subr.mxu0 0.0
        %246 = vmatpush1.msra.mxu0 0.0
        %247 = vmatprep.mubr.f32.mxu0 0.0
        %248 = vmatmul.mubr.f32.gmra.mrb[0].mxu0 %v181
        %v249 = vpop.f32.mrb[0].mxu0
        %v250 = vadd.f32 0.0, %v249
        %v251 = vpop.f32.mrb[0].mxu0
        %252 = vdwg.mxu0
        %v253 = vld [vmem:[#allocation5 + $0x28] sm:$0xff]
        %255 = vrot.lane.b32.xlu0 %v250, 96
        %v256 = vpop.permute.xlu0 %255
        %vm257 = vcmask 130048
        %v258 = vsel %vm257, %v250, 0
        %v260 = vsel %vm257, %v256, 0
        %262 = vmatprep.subr.mxu0 0.0
        %263 = vmatpush1.xpose.msra.mxu0 %v260
        %264 = vmatprep.subr.mxu0 0.0
        %265 = vmatpush1.xpose.msra.mxu0 0.0
        %266 = vmatprep.subr.mxu0 0.0
        %267 = vmatpush1.xpose.msra.mxu0 0.0
        %268 = vmatprep.subr.mxu0 0.0
        %269 = vmatpush1.xpose.msra.mxu0 0.0
        %270 = vmatprep.subr.mxu0 0.0
        %271 = vmatpush1.xpose.msra.mxu0 0.0
        %272 = vmatprep.subr.mxu0 0.0
        %273 = vmatpush1.xpose.msra.mxu0 0.0
        %274 = vmatprep.subr.mxu0 0.0
        %275 = vmatpush1.xpose.msra.mxu0 0.0
        %276 = vmatprep.subr.mxu0 0.0
        %277 = vmatpush1.xpose.msra.mxu0 0.0
        %278 = vmatprep.subr.mxu0 0.0
        %279 = vmatpush1.xpose.msra.mxu0 0.0
        %280 = vmatprep.subr.mxu0 0.0
        %281 = vmatpush1.xpose.msra.mxu0 0.0
        %282 = vmatprep.subr.mxu0 0.0
        %283 = vmatpush1.xpose.msra.mxu0 0.0
        %284 = vmatprep.subr.mxu0 0.0
        %285 = vmatpush1.xpose.msra.mxu0 0.0
        %286 = vmatprep.subr.mxu0 0.0
        %287 = vmatpush1.xpose.msra.mxu0 0.0
        %288 = vmatprep.subr.mxu0 0.0
        %289 = vmatpush1.xpose.msra.mxu0 0.0
        %290 = vmatprep.subr.mxu0 0.0
        %291 = vmatpush1.xpose.msra.mxu0 0.0
        %292 = vmatprep.subr.mxu0 0.0
        %293 = vmatpush1.xpose.msra.mxu0 0.0
        %294 = vmatprep.subr.mxu0 0.0
        %295 = vmatpush1.xpose.msra.mxu0 0.0
        %296 = vmatprep.subr.mxu0 0.0
        %297 = vmatpush1.xpose.msra.mxu0 0.0
        %298 = vmatprep.subr.mxu0 0.0
        %299 = vmatpush1.xpose.msra.mxu0 0.0
        %300 = vmatprep.subr.mxu0 0.0
        %301 = vmatpush1.xpose.msra.mxu0 0.0
        %302 = vmatprep.subr.mxu0 0.0
        %303 = vmatpush1.xpose.msra.mxu0 0.0
        %304 = vmatprep.subr.mxu0 0.0
        %305 = vmatpush1.xpose.msra.mxu0 0.0
        %306 = vmatprep.subr.mxu0 0.0
        %307 = vmatpush1.xpose.msra.mxu0 0.0
        %308 = vmatprep.subr.mxu0 0.0
        %309 = vmatpush1.xpose.msra.mxu0 0.0
        %310 = vmatprep.subr.mxu0 0.0
        %311 = vmatpush1.xpose.msra.mxu0 0.0
        %312 = vmatprep.subr.mxu0 0.0
        %313 = vmatpush1.xpose.msra.mxu0 0.0
        %314 = vmatprep.subr.mxu0 0.0
        %315 = vmatpush1.xpose.msra.mxu0 0.0
        %316 = vmatprep.subr.mxu0 0.0
        %317 = vmatpush1.xpose.msra.mxu0 0.0
        %318 = vmatprep.subr.mxu0 0.0
        %319 = vmatpush1.xpose.msra.mxu0 0.0
        %320 = vmatprep.subr.mxu0 0.0
        %321 = vmatpush1.xpose.msra.mxu0 0.0
        %322 = vmatprep.subr.mxu0 0.0
        %323 = vmatpush1.xpose.msra.mxu0 0.0
        %324 = vmatprep.subr.mxu0 0.0
        %325 = vmatpush1.xpose.msra.mxu0 0.0
        %326 = vmatprep.mubr.f32.mxu0 0.0
        %327 = vmatmul.mubr.f32.gmra.mrb[0].mxu0 %v258
        %v328 = vpop.f32.mrb[0].mxu0
        %v329 = vadd.f32 0.0, %v328
        %v330 = vpop.f32.mrb[0].mxu0
        %331 = vdwg.mxu0
        %v332 = vmul.f32 %v329, 0.17677669
        %v333 = vadd.f32 %v332, %v253
        %vm334 = vcmask 64512
        %v335 = vsel %vm334, %v333, -inf
        %336 = vmax.xlane.f32.xlu0 %v335
        %v337 = vpop.xlane.xlu0 %336
        %v338 = vsub.f32 %v333, %v337
        %v339 = vmul.f32 %v338, 1.442695
        %v340 = vpow.pop %v339
        %v341 = vsel %vm334, %v340, 0.0
        %342 = vadd.xlane.f32.xlu0 %v341
        %v343 = vpop.xlane.xlu0 %342
        %v344 = vrcp.pop %v343
        %v345 = vmul.f32 %v340, %v344
        %346 = vrot.lane.b32.xlu0 %v250, 64
        %v347 = vpop.permute.xlu0 %346
        %v350 = vsel %vm334, %v345, 0
        %352 = vmatprep.subr.mxu0 0.0
        %353 = vmatpush1.msra.mxu0 %v347
        %354 = vmatprep.subr.mxu0 0.0
        %355 = vmatpush1.msra.mxu0 0.0
        %356 = vmatprep.subr.mxu0 0.0
        %357 = vmatpush1.msra.mxu0 0.0
        %358 = vmatprep.subr.mxu0 0.0
        %359 = vmatpush1.msra.mxu0 0.0
        %360 = vmatprep.subr.mxu0 0.0
        %361 = vmatpush1.msra.mxu0 0.0
        %362 = vmatprep.subr.mxu0 0.0
        %363 = vmatpush1.msra.mxu0 0.0
        %364 = vmatprep.subr.mxu0 0.0
        %365 = vmatpush1.msra.mxu0 0.0
        %366 = vmatprep.subr.mxu0 0.0
        %367 = vmatpush1.msra.mxu0 0.0
        %368 = vmatprep.subr.mxu0 0.0
        %369 = vmatpush1.msra.mxu0 0.0
        %370 = vmatprep.subr.mxu0 0.0
        %371 = vmatpush1.msra.mxu0 0.0
        %372 = vmatprep.subr.mxu0 0.0
        %373 = vmatpush1.msra.mxu0 0.0
        %374 = vmatprep.subr.mxu0 0.0
        %375 = vmatpush1.msra.mxu0 0.0
        %376 = vmatprep.subr.mxu0 0.0
        %377 = vmatpush1.msra.mxu0 0.0
        %378 = vmatprep.subr.mxu0 0.0
        %379 = vmatpush1.msra.mxu0 0.0
        %380 = vmatprep.subr.mxu0 0.0
        %381 = vmatpush1.msra.mxu0 0.0
        %382 = vmatprep.subr.mxu0 0.0
        %383 = vmatpush1.msra.mxu0 0.0
        %384 = vmatprep.subr.mxu0 0.0
        %385 = vmatpush1.msra.mxu0 0.0
        %386 = vmatprep.subr.mxu0 0.0
        %387 = vmatpush1.msra.mxu0 0.0
        %388 = vmatprep.subr.mxu0 0.0
        %389 = vmatpush1.msra.mxu0 0.0
        %390 = vmatprep.subr.mxu0 0.0
        %391 = vmatpush1.msra.mxu0 0.0
        %392 = vmatprep.subr.mxu0 0.0
        %393 = vmatpush1.msra.mxu0 0.0
        %394 = vmatprep.subr.mxu0 0.0
        %395 = vmatpush1.msra.mxu0 0.0
        %396 = vmatprep.subr.mxu0 0.0
        %397 = vmatpush1.msra.mxu0 0.0
        %398 = vmatprep.subr.mxu0 0.0
        %399 = vmatpush1.msra.mxu0 0.0
        %400 = vmatprep.subr.mxu0 0.0
        %401 = vmatpush1.msra.mxu0 0.0
        %402 = vmatprep.subr.mxu0 0.0
        %403 = vmatpush1.msra.mxu0 0.0
        %404 = vmatprep.subr.mxu0 0.0
        %405 = vmatpush1.msra.mxu0 0.0
        %406 = vmatprep.subr.mxu0 0.0
        %407 = vmatpush1.msra.mxu0 0.0
        %408 = vmatprep.subr.mxu0 0.0
        %409 = vmatpush1.msra.mxu0 0.0
        %410 = vmatprep.subr.mxu0 0.0
        %411 = vmatpush1.msra.mxu0 0.0
        %412 = vmatprep.subr.mxu0 0.0
        %413 = vmatpush1.msra.mxu0 0.0
        %414 = vmatprep.subr.mxu0 0.0
        %415 = vmatpush1.msra.mxu0 0.0
        %416 = vmatprep.mubr.f32.mxu0 0.0
        %417 = vmatmul.mubr.f32.gmra.mrb[0].mxu0 %v350
        %v418 = vpop.f32.mrb[0].mxu0
        %v419 = vadd.f32 0.0, %v418
        %v420 = vpop.f32.mrb[0].mxu0
        %421 = vdwg.mxu0
        %v422 = vld [vmem:[#allocation5] sm:$0xff]
        %v423 = vld [vmem:[#allocation5 + $0x8] sm:$0xff]
        %424 = vrot.lane.b32.xlu0 %v250, 112
        %v425 = vpop.permute.xlu0 %424
        %426 = vrot.lane.b32.xlu0 %v250, 80
        %v427 = vpop.permute.xlu0 %426
        %v428 = vsel %vm257, %v425, 0
        %v430 = vsel %vm257, %v427, 0
        %432 = vmatprep.subr.mxu0 0.0
        %433 = vmatpush1.xpose.msra.mxu0 %v430
        %434 = vmatprep.subr.mxu0 0.0
        %435 = vmatpush1.xpose.msra.mxu0 0.0
        %436 = vmatprep.subr.mxu0 0.0
        %437 = vmatpush1.xpose.msra.mxu0 0.0
        %438 = vmatprep.subr.mxu0 0.0
        %439 = vmatpush1.xpose.msra.mxu0 0.0
        %440 = vmatprep.subr.mxu0 0.0
        %441 = vmatpush1.xpose.msra.mxu0 0.0
        %442 = vmatprep.subr.mxu0 0.0
        %443 = vmatpush1.xpose.msra.mxu0 0.0
        %444 = vmatprep.subr.mxu0 0.0
        %445 = vmatpush1.xpose.msra.mxu0 0.0
        %446 = vmatprep.subr.mxu0 0.0
        %447 = vmatpush1.xpose.msra.mxu0 0.0
        %448 = vmatprep.subr.mxu0 0.0
        %449 = vmatpush1.xpose.msra.mxu0 0.0
        %450 = vmatprep.subr.mxu0 0.0
        %451 = vmatpush1.xpose.msra.mxu0 0.0
        %452 = vmatprep.subr.mxu0 0.0
        %453 = vmatpush1.xpose.msra.mxu0 0.0
        %454 = vmatprep.subr.mxu0 0.0
        %455 = vmatpush1.xpose.msra.mxu0 0.0
        %456 = vmatprep.subr.mxu0 0.0
        %457 = vmatpush1.xpose.msra.mxu0 0.0
        %458 = vmatprep.subr.mxu0 0.0
        %459 = vmatpush1.xpose.msra.mxu0 0.0
        %460 = vmatprep.subr.mxu0 0.0
        %461 = vmatpush1.xpose.msra.mxu0 0.0
        %462 = vmatprep.subr.mxu0 0.0
        %463 = vmatpush1.xpose.msra.mxu0 0.0
        %464 = vmatprep.subr.mxu0 0.0
        %465 = vmatpush1.xpose.msra.mxu0 0.0
        %466 = vmatprep.subr.mxu0 0.0
        %467 = vmatpush1.xpose.msra.mxu0 0.0
        %468 = vmatprep.subr.mxu0 0.0
        %469 = vmatpush1.xpose.msra.mxu0 0.0
        %470 = vmatprep.subr.mxu0 0.0
        %471 = vmatpush1.xpose.msra.mxu0 0.0
        %472 = vmatprep.subr.mxu0 0.0
        %473 = vmatpush1.xpose.msra.mxu0 0.0
        %474 = vmatprep.subr.mxu0 0.0
        %475 = vmatpush1.xpose.msra.mxu0 0.0
        %476 = vmatprep.subr.mxu0 0.0
        %477 = vmatpush1.xpose.msra.mxu0 0.0
        %478 = vmatprep.subr.mxu0 0.0
        %479 = vmatpush1.xpose.msra.mxu0 0.0
        %480 = vmatprep.subr.mxu0 0.0
        %481 = vmatpush1.xpose.msra.mxu0 0.0
        %482 = vmatprep.subr.mxu0 0.0
        %483 = vmatpush1.xpose.msra.mxu0 0.0
        %484 = vmatprep.subr.mxu0 0.0
        %485 = vmatpush1.xpose.msra.mxu0 0.0
        %486 = vmatprep.subr.mxu0 0.0
        %487 = vmatpush1.xpose.msra.mxu0 0.0
        %488 = vmatprep.subr.mxu0 0.0
        %489 = vmatpush1.xpose.msra.mxu0 0.0
        %490 = vmatprep.subr.mxu0 0.0
        %491 = vmatpush1.xpose.msra.mxu0 0.0
        %492 = vmatprep.subr.mxu0 0.0
        %493 = vmatpush1.xpose.msra.mxu0 0.0
        %494 = vmatprep.subr.mxu0 0.0
        %495 = vmatpush1.xpose.msra.mxu0 0.0
        %496 = vmatprep.mubr.f32.mxu0 0.0
        %497 = vmatmul.mubr.f32.gmra.mrb[0].mxu0 %v428
        %v498 = vpop.f32.mrb[0].mxu0
        %v499 = vadd.f32 0.0, %v498
        %v500 = vpop.f32.mrb[0].mxu0
        %501 = vdwg.mxu0
        %v502 = vmul.f32 %v499, 0.17677669
        %v503 = vadd.f32 %v502, %v253
        %v504 = vsel %vm334, %v503, -inf
        %505 = vmax.xlane.f32.xlu0 %v504
        %v506 = vpop.xlane.xlu0 %505
        %v507 = vsub.f32 %v503, %v506
        %v508 = vmul.f32 %v507, 1.442695
        %v509 = vpow.pop %v508
        %v510 = vsel %vm334, %v509, 0.0
        %511 = vadd.xlane.f32.xlu0 %v510
        %v512 = vpop.xlane.xlu0 %511
        %v513 = vrcp.pop %v512
        %v514 = vmul.f32 %v509, %v513
        %515 = vrot.lane.b32.xlu0 %v250, 48
        %v516 = vpop.permute.xlu0 %515
        %v519 = vsel %vm334, %v514, 0
        %521 = vmatprep.subr.mxu0 0.0
        %522 = vmatpush1.msra.mxu0 %v516
        %523 = vmatprep.subr.mxu0 0.0
        %524 = vmatpush1.msra.mxu0 0.0
        %525 = vmatprep.subr.mxu0 0.0
        %526 = vmatpush1.msra.mxu0 0.0
        %527 = vmatprep.subr.mxu0 0.0
        %528 = vmatpush1.msra.mxu0 0.0
        %529 = vmatprep.subr.mxu0 0.0
        %530 = vmatpush1.msra.mxu0 0.0
        %531 = vmatprep.subr.mxu0 0.0
        %532 = vmatpush1.msra.mxu0 0.0
        %533 = vmatprep.subr.mxu0 0.0
        %534 = vmatpush1.msra.mxu0 0.0
        %535 = vmatprep.subr.mxu0 0.0
        %536 = vmatpush1.msra.mxu0 0.0
        %537 = vmatprep.subr.mxu0 0.0
        %538 = vmatpush1.msra.mxu0 0.0
        %539 = vmatprep.subr.mxu0 0.0
        %540 = vmatpush1.msra.mxu0 0.0
        %541 = vmatprep.subr.mxu0 0.0
        %542 = vmatpush1.msra.mxu0 0.0
        %543 = vmatprep.subr.mxu0 0.0
        %544 = vmatpush1.msra.mxu0 0.0
        %545 = vmatprep.subr.mxu0 0.0
        %546 = vmatpush1.msra.mxu0 0.0
        %547 = vmatprep.subr.mxu0 0.0
        %548 = vmatpush1.msra.mxu0 0.0
        %549 = vmatprep.subr.mxu0 0.0
        %550 = vmatpush1.msra.mxu0 0.0
        %551 = vmatprep.subr.mxu0 0.0
        %552 = vmatpush1.msra.mxu0 0.0
        %553 = vmatprep.subr.mxu0 0.0
        %554 = vmatpush1.msra.mxu0 0.0
        %555 = vmatprep.subr.mxu0 0.0
        %556 = vmatpush1.msra.mxu0 0.0
        %557 = vmatprep.subr.mxu0 0.0
        %558 = vmatpush1.msra.mxu0 0.0
        %559 = vmatprep.subr.mxu0 0.0
        %560 = vmatpush1.msra.mxu0 0.0
        %561 = vmatprep.subr.mxu0 0.0
        %562 = vmatpush1.msra.mxu0 0.0
        %563 = vmatprep.subr.mxu0 0.0
        %564 = vmatpush1.msra.mxu0 0.0
        %565 = vmatprep.subr.mxu0 0.0
        %566 = vmatpush1.msra.mxu0 0.0
        %567 = vmatprep.subr.mxu0 0.0
        %568 = vmatpush1.msra.mxu0 0.0
        %569 = vmatprep.subr.mxu0 0.0
        %570 = vmatpush1.msra.mxu0 0.0
        %571 = vmatprep.subr.mxu0 0.0
        %572 = vmatpush1.msra.mxu0 0.0
        %573 = vmatprep.subr.mxu0 0.0
        %574 = vmatpush1.msra.mxu0 0.0
        %575 = vmatprep.subr.mxu0 0.0
        %576 = vmatpush1.msra.mxu0 0.0
        %577 = vmatprep.subr.mxu0 0.0
        %578 = vmatpush1.msra.mxu0 0.0
        %579 = vmatprep.subr.mxu0 0.0
        %580 = vmatpush1.msra.mxu0 0.0
        %581 = vmatprep.subr.mxu0 0.0
        %582 = vmatpush1.msra.mxu0 0.0
        %583 = vmatprep.subr.mxu0 0.0
        %584 = vmatpush1.msra.mxu0 0.0
        %585 = vmatprep.mubr.f32.mxu0 0.0
        %586 = vmatmul.mubr.f32.gmra.mrb[0].mxu0 %v519
        %v587 = vpop.f32.mrb[0].mxu0
        %v588 = vadd.f32 0.0, %v587
        %v589 = vpop.f32.mrb[0].mxu0
        %590 = vdwg.mxu0
        %593 = vrot.lane.b32.xlu0 %v177, 32
        %v594 = vpop.permute.xlu0 %593
        %595 = vrot.lane.b32.xlu0 %v178, 32
        %v596 = vpop.permute.xlu0 %595
        %v600 = vsel %vm257, %v588, 0
        %602 = vmatprep.subr.mxu0 0.0
        %603 = vmatpush1.msra.mxu0 %v594
        %604 = vmatprep.subr.mxu0 0.0
        %605 = vmatpush1.msra.mxu0 %v596
        %606 = vmatprep.subr.mxu0 0.0
        %607 = vmatpush1.msra.mxu0 0.0
        %608 = vmatprep.subr.mxu0 0.0
        %609 = vmatpush1.msra.mxu0 0.0
        %610 = vmatprep.subr.mxu0 0.0
        %611 = vmatpush1.msra.mxu0 0.0
        %612 = vmatprep.subr.mxu0 0.0
        %613 = vmatpush1.msra.mxu0 0.0
        %614 = vmatprep.subr.mxu0 0.0
        %615 = vmatpush1.msra.mxu0 0.0
        %616 = vmatprep.subr.mxu0 0.0
        %617 = vmatpush1.msra.mxu0 0.0
        %618 = vmatprep.subr.mxu0 0.0
        %619 = vmatpush1.msra.mxu0 0.0
        %620 = vmatprep.subr.mxu0 0.0
        %621 = vmatpush1.msra.mxu0 0.0
        %622 = vmatprep.subr.mxu0 0.0
        %623 = vmatpush1.msra.mxu0 0.0
        %624 = vmatprep.subr.mxu0 0.0
        %625 = vmatpush1.msra.mxu0 0.0
        %626 = vmatprep.subr.mxu0 0.0
        %627 = vmatpush1.msra.mxu0 0.0
        %628 = vmatprep.subr.mxu0 0.0
        %629 = vmatpush1.msra.mxu0 0.0
        %630 = vmatprep.subr.mxu0 0.0
        %631 = vmatpush1.msra.mxu0 0.0
        %632 = vmatprep.subr.mxu0 0.0
        %633 = vmatpush1.msra.mxu0 0.0
        %634 = vmatprep.subr.mxu0 0.0
        %635 = vmatpush1.msra.mxu0 0.0
        %636 = vmatprep.subr.mxu0 0.0
        %637 = vmatpush1.msra.mxu0 0.0
        %638 = vmatprep.subr.mxu0 0.0
        %639 = vmatpush1.msra.mxu0 0.0
        %640 = vmatprep.subr.mxu0 0.0
        %641 = vmatpush1.msra.mxu0 0.0
        %642 = vmatprep.subr.mxu0 0.0
        %643 = vmatpush1.msra.mxu0 0.0
        %644 = vmatprep.subr.mxu0 0.0
        %645 = vmatpush1.msra.mxu0 0.0
        %646 = vmatprep.subr.mxu0 0.0
        %647 = vmatpush1.msra.mxu0 0.0
        %648 = vmatprep.subr.mxu0 0.0
        %649 = vmatpush1.msra.mxu0 0.0
        %650 = vmatprep.subr.mxu0 0.0
        %651 = vmatpush1.msra.mxu0 0.0
        %652 = vmatprep.subr.mxu0 0.0
        %653 = vmatpush1.msra.mxu0 0.0
        %654 = vmatprep.subr.mxu0 0.0
        %655 = vmatpush1.msra.mxu0 0.0
        %656 = vmatprep.subr.mxu0 0.0
        %657 = vmatpush1.msra.mxu0 0.0
        %658 = vmatprep.subr.mxu0 0.0
        %659 = vmatpush1.msra.mxu0 0.0
        %660 = vmatprep.subr.mxu0 0.0
        %661 = vmatpush1.msra.mxu0 0.0
        %662 = vmatprep.subr.mxu0 0.0
        %663 = vmatpush1.msra.mxu0 0.0
        %664 = vmatprep.subr.mxu0 0.0
        %665 = vmatpush1.msra.mxu0 0.0
        %666 = vmatprep.mubr.f32.mxu0 0.0
        %667 = vmatmul.mubr.f32.gmra.mrb[0].mxu0 %v600
        %v668 = vpop.f32.mrb[0].mxu0
        %v669 = vadd.f32 0.0, %v668
        %v670 = vpop.f32.mrb[0].mxu0
        %671 = vdwg.mxu0
        %674 = vrot.lane.b32.xlu0 %v422, 32
        %v675 = vpop.permute.xlu0 %674
        %676 = vrot.lane.b32.xlu0 %v423, 32
        %v677 = vpop.permute.xlu0 %676
        %v681 = vsel %vm257, %v419, 0
        %683 = vmatprep.subr.mxu0 0.0
        %684 = vmatpush1.msra.mxu0 %v675
        %685 = vmatprep.subr.mxu0 0.0
        %686 = vmatpush1.msra.mxu0 %v677
        %687 = vmatprep.subr.mxu0 0.0
        %688 = vmatpush1.msra.mxu0 0.0
        %689 = vmatprep.subr.mxu0 0.0
        %690 = vmatpush1.msra.mxu0 0.0
        %691 = vmatprep.subr.mxu0 0.0
        %692 = vmatpush1.msra.mxu0 0.0
        %693 = vmatprep.subr.mxu0 0.0
        %694 = vmatpush1.msra.mxu0 0.0
        %695 = vmatprep.subr.mxu0 0.0
        %696 = vmatpush1.msra.mxu0 0.0
        %697 = vmatprep.subr.mxu0 0.0
        %698 = vmatpush1.msra.mxu0 0.0
        %699 = vmatprep.subr.mxu0 0.0
        %700 = vmatpush1.msra.mxu0 0.0
        %701 = vmatprep.subr.mxu0 0.0
        %702 = vmatpush1.msra.mxu0 0.0
        %703 = vmatprep.subr.mxu0 0.0
        %704 = vmatpush1.msra.mxu0 0.0
        %705 = vmatprep.subr.mxu0 0.0
        %706 = vmatpush1.msra.mxu0 0.0
        %707 = vmatprep.subr.mxu0 0.0
        %708 = vmatpush1.msra.mxu0 0.0
        %709 = vmatprep.subr.mxu0 0.0
        %710 = vmatpush1.msra.mxu0 0.0
        %711 = vmatprep.subr.mxu0 0.0
        %712 = vmatpush1.msra.mxu0 0.0
        %713 = vmatprep.subr.mxu0 0.0
        %714 = vmatpush1.msra.mxu0 0.0
        %715 = vmatprep.subr.mxu0 0.0
        %716 = vmatpush1.msra.mxu0 0.0
        %717 = vmatprep.subr.mxu0 0.0
        %718 = vmatpush1.msra.mxu0 0.0
        %719 = vmatprep.subr.mxu0 0.0
        %720 = vmatpush1.msra.mxu0 0.0
        %721 = vmatprep.subr.mxu0 0.0
        %722 = vmatpush1.msra.mxu0 0.0
        %723 = vmatprep.subr.mxu0 0.0
        %724 = vmatpush1.msra.mxu0 0.0
        %725 = vmatprep.subr.mxu0 0.0
        %726 = vmatpush1.msra.mxu0 0.0
        %727 = vmatprep.subr.mxu0 0.0
        %728 = vmatpush1.msra.mxu0 0.0
        %729 = vmatprep.subr.mxu0 0.0
        %730 = vmatpush1.msra.mxu0 0.0
        %731 = vmatprep.subr.mxu0 0.0
        %732 = vmatpush1.msra.mxu0 0.0
        %733 = vmatprep.subr.mxu0 0.0
        %734 = vmatpush1.msra.mxu0 0.0
        %735 = vmatprep.subr.mxu0 0.0
        %736 = vmatpush1.msra.mxu0 0.0
        %737 = vmatprep.subr.mxu0 0.0
        %738 = vmatpush1.msra.mxu0 0.0
        %739 = vmatprep.subr.mxu0 0.0
        %740 = vmatpush1.msra.mxu0 0.0
        %741 = vmatprep.subr.mxu0 0.0
        %742 = vmatpush1.msra.mxu0 0.0
        %743 = vmatprep.subr.mxu0 0.0
        %744 = vmatpush1.msra.mxu0 0.0
        %745 = vmatprep.subr.mxu0 0.0
        %746 = vmatpush1.msra.mxu0 0.0
        %747 = vmatprep.mubr.f32.mxu0 0.0
        %748 = vmatmul.mubr.f32.gmra.mrb[0].mxu0 %v681
        %v749 = vpop.f32.mrb[0].mxu0
        %v750 = vadd.f32 %v669, %v749
        %v751 = vpop.f32.mrb[0].mxu0
        %752 = vdwg.mxu0
        %v753 = vld [vmem:[#allocation5 + $0x20] sm:$0x1]
        %v754 = vlaneseq
        %v755 = vshrl.u32 %v754, 7
        %v756 = vsub.s32 0, %v755
        %v757 = vrot.slane %v753, %v756
        %v758 = vadd.f32 %v750, %v757
        %759 = vst.msk [vmem:[%s173] sm:$0xff] %vm179, %v758
        %s760 = sand.u32 %s75, 1
        %s761 = scalar_lea.sflag [#allocation4], %s760
        %s762 = sand.u32 %s75, 1
        %s763 = smul.addr %s762, 8
        %s764 = scalar_lea.vmem [#allocation7], %s763
        // Predicated region
        $region37: #{tpu_custom_call.1} parent=27 // pred_check
          %p765 = pneg %p85
        $region38: #{tpu_custom_call.1} parent=27 // pred_check_branch
          %767 = sbr.rel (%p765) target = $region40
        $region39: #{tpu_custom_call.1} parent=27 // pred_region
          %s769 = ssub.s32 128, 128
          %770 = vsyncadd %s761, %s769
          %s771 = smul.addr %s20, 128
          %s772 = scalar_lea.hbm %s2, %s771
          %s774 = sshll.u32 %s764, 4
          %s775 = int_to_ptr.vmem [resolvable:$true] %s774
          %777 = dma.vmem_to_hbm [thread:$0]  %s775, 128, %s772, %s761
        $region40: #{tpu_custom_call.1} parent=27 // pred_fallthru
          _
      $region28: #{tpu_custom_call.1} parent=5 // pred_fallthru
        _
      %p778 = scmp.le.s32.totalorder 2, %s15
      // Predicated region
      $region41: #{tpu_custom_call.1} parent=5 // pred_check
        %p779 = pneg %p778
      $region42: #{tpu_custom_call.1} parent=5 // pred_check_branch
        %781 = sbr.rel (%p779) target = $region44
      $region43: #{tpu_custom_call.1} parent=5 // pred_region
        %s782 = ssub.s32 %s15, 2
        // Predicated region
        $region45: #{tpu_custom_call.1} parent=43 // pred_check
          %p783 = pneg %p91
        $region46: #{tpu_custom_call.1} parent=43 // pred_check_branch
          %785 = sbr.rel (%p783) target = $region48
        $region47: #{tpu_custom_call.1} parent=43 // pred_region
          %s786 = sand.u32 %s76, 1
          %s787 = scalar_lea.sflag [#allocation4], %s786
          %s788 = sand.u32 %s76, 1
          %s789 = smul.addr %s788, 8
          %s790 = scalar_lea.vmem [#allocation7], %s789
          %791 = dma.done %s787, 128
        $region48: #{tpu_custom_call.1} parent=43 // pred_fallthru
          _
      $region44: #{tpu_custom_call.1} parent=5 // pred_fallthru
        _
    $region6: #{tpu_custom_call.1} parent=1 // loop_footer
      %s19 = sadd.s32 1, %s15
    $region7: #{tpu_custom_call.1} parent=1 // loop_footer_branch
      %14 = sbr.rel target = $region3
    $region8: #{tpu_custom_call.1} parent=1 // loop_exit
      _
    %792 = vsyncpa [#allocation3], 1
    %s793 = scalar_lea.sflag [#allocation3], 1
    %794 = vsyncpa %s793, 1
    %795 = vsyncpa [#allocation6], 1
    %796 = vsyncpa [#allocation4], 1
    %s797 = scalar_lea.sflag [#allocation4], 1
    %798 = vsyncpa %s797, 1

</llo_original>
